<compile_context>
chip_gen: v7x
topology: tpu7x:2x2x1
jax: 0.10.0
libtpu: 0.0.40
codegen_flags: <defaults>
</compile_context>

<pallas_src>
import functools

import jax
import jax.numpy as jnp
import numpy as np
from jax import lax
from jax.experimental import pallas as pl
from jax.experimental.pallas import tpu as pltpu


def _layer_norm(v, gamma, beta, eps=1e-5):
    mu = jnp.mean(v, axis=-1, keepdims=True)
    var = jnp.mean((v - mu) ** 2, axis=-1, keepdims=True)
    return (v - mu) * lax.rsqrt(var + eps) * gamma + beta


def s4att_layer_kernel(x_ref, kT_ref, dskip_ref, w1_ref, w2_ref, b1_ref,
                       b2_ref, gamma_ref, beta_ref, o_ref, pad_ref, acc_ref, *,
                       prenorm):
    """One (sequence, layer) grid step.

    x_ref / o_ref: (L, D), one sequence.  kT_ref: (L, D) with kT[m] = K[:, m].
    pad_ref: (2L, D) zero-padded shift buffer (VMEM scratch).
    acc_ref: (L, D) activation carry across the layer grid axis.
    """
    layer = pl.program_id(1)
    nlayers = pl.num_programs(1)
    L, D = x_ref.shape

    @pl.when(layer == 0)
    def _():
        acc_ref[...] = x_ref[...].astype(jnp.float32)
        # Zero history half of the shift buffer.  Re-written at layer 0 of
        # every batch step so it is valid on whichever core runs this batch
        # element under megacore sharding.
        pad_ref[0:L, :] = jnp.zeros((L, D), jnp.float32)

    x = acc_ref[...]                                        # (L, D) resident carry
    gamma = gamma_ref[...]                                  # (1, D)
    beta = beta_ref[...]
    z = _layer_norm(x, gamma, beta) if prenorm else x

    # Causal depthwise SSM convolution along L.  pad_ref holds [zeros(L); z];
    # the window starting at L - m is z shifted down by m with zero fill, so
    # no per-tap causal mask / batch-boundary mask is needed.
    # TODO(synk): replace the O(L^2) tap loop with the S4D FFT / scan
    # formulation in the wrapper for production-scale L.
    pad_ref[L:2 * L, :] = z                                 # aligned store (L % 8 == 0)
    kt = kT_ref[...]                                        # (L, D)
    y = z * kt[0:1, :]                                      # tap m = 0
    for m in range(1, L):                                   # static taps, static starts
        y = y + pad_ref[L - m:2 * L - m, :] * kt[m:m + 1, :]
    y = y + z * dskip_ref[...]                              # skip term D * u

    # TODO(synk): PyTorch nn.GELU() is exact (erf); tanh approximation used.
    y = jax.nn.gelu(y, approximate=True)

    # Position-wise Conv1d(k=1, D -> 2D) + GLU.  Weights arrive pre-split and
    # pre-cast to bf16; activations cast here; f32 accumulation on the MXU.
    yb = y.astype(jnp.bfloat16)
    a = jnp.dot(yb, w1_ref[...], preferred_element_type=jnp.float32) + b1_ref[...]
    g = jnp.dot(yb, w2_ref[...], preferred_element_type=jnp.float32) + b2_ref[...]
    out = a * jax.nn.sigmoid(g)

    x = out + x                                             # residual (dropout = identity, eval)
    if not prenorm:
        x = _layer_norm(x, gamma, beta)
    acc_ref[...] = x

    @pl.when(layer == nlayers - 1)
    def _():
        o_ref[...] = acc_ref[...].astype(o_ref.dtype)


def s4att_forward(x, params, *, prenorm=True):
    """Fused Pallas forward for the whole S4Att stack.  x: (B, L, D)."""
    B, L, D = x.shape
    nlayers = len(params)
    assert L % 8 == 0, "sequence length must be a multiple of the sublane tile (8)"

    kT, dskip, w1, w2, b1, b2, gam, bet = ([] for _ in range(8))
    for p in params:
        K = s4d_ssm_kernel(p['log_dt'], p['C_re'], p['C_im'],
                           p['log_A_real'], p['A_imag'], L)      # (D, L)
        kT.append(K.T)                                           # (L, D)
        dskip.append(p['dskip'].reshape(1, D))
        w1.append(p['w'][:, :D])
        w2.append(p['w'][:, D:])
        b1.append(p['b'][:D].reshape(1, D))
        b2.append(p['b'][D:].reshape(1, D))
        gam.append(p['gamma'].reshape(1, D))
        bet.append(p['beta'].reshape(1, D))
    stk = lambda xs: jnp.stack(xs).astype(jnp.float32)
    stk16 = lambda xs: jnp.stack(xs).astype(jnp.bfloat16)        # MXU operand dtype

    # Blocks indexed by the layer grid axis (leading dim squeezed in-kernel).
    def per_layer(shape):
        return pl.BlockSpec((None,) + shape, lambda b, l: (l,) + (0,) * len(shape))

    # Blocks indexed by the batch grid axis (one sequence per step).
    def per_batch(shape):
        return pl.BlockSpec((None,) + shape, lambda b, l: (b,) + (0,) * len(shape))

    # Explicit VMEM budget: per-step blocks are double-buffered by the
    # pipeline; scratch (shift buffer + activation carry) is single-buffered.
    per_step_bytes = 2 * (2 * L * D * 4          # x block + out block (f32)
                          + L * D * 4            # kT block (f32)
                          + 2 * D * D * 2        # w1 + w2 blocks (bf16)
                          + 5 * D * 4)           # dskip, b1, b2, gamma, beta
    scratch_bytes = (2 * L * D + L * D) * 4
    vmem_limit = int(min(64 << 20,               # fits v7x's 64 MiB physical VMEM
                         max(per_step_bytes + scratch_bytes + (4 << 20), 16 << 20)))

    kernel = functools.partial(s4att_layer_kernel, prenorm=prenorm)
    out = pl.pallas_call(
        kernel,
        out_shape=jax.ShapeDtypeStruct((B, L, D), x.dtype),
        grid_spec=pltpu.PrefetchScalarGridSpec(
            num_scalar_prefetch=0,
            grid=(B, nlayers),                   # batch: parallel, layer: carried
            in_specs=[
                per_batch((L, D)),               # x, one sequence per batch step
                per_layer((L, D)),               # K^T for this layer
                per_layer((1, D)),               # D skip
                per_layer((D, D)),               # W, first GLU half (bf16)
                per_layer((D, D)),               # W, gate GLU half (bf16)
                per_layer((1, D)),               # bias, first half
                per_layer((1, D)),               # bias, gate half
                per_layer((1, D)),               # LayerNorm gamma
                per_layer((1, D)),               # LayerNorm beta
            ],
            out_specs=per_batch((L, D)),         # same block across the layer axis
            scratch_shapes=[pltpu.VMEM((2 * L, D), jnp.float32),   # shift buffer
                            pltpu.VMEM((L, D), jnp.float32)]),     # activation carry
        compiler_params=pltpu.CompilerParams(
            dimension_semantics=("parallel", "arbitrary"),
            vmem_limit_bytes=vmem_limit),
    )(x, stk(kT), stk(dskip), stk16(w1), stk16(w2),
      stk(b1), stk(b2), stk(gam), stk(bet))
    return out


# ---------------------------------------------------------------------------
# S4D SSM convolution kernel (parameters -> K(D, L)); glue, plain JAX, real
# arithmetic only (no complex dtypes needed on device).
# ---------------------------------------------------------------------------
def s4d_ssm_kernel(log_dt, C_re, C_im, log_A_real, A_imag, L):
    dt = jnp.exp(log_dt)[:, None]                     # (D, 1)
    A_re = -jnp.exp(log_A_real)                       # (D, N)
    A_im = A_imag                                     # (D, N)
    dtA_re = A_re * dt
    dtA_im = A_im * dt
    # Ct = C * (exp(dtA) - 1) / A, expanded in real arithmetic.
    e_re = jnp.exp(dtA_re) * jnp.cos(dtA_im) - 1.0
    e_im = jnp.exp(dtA_re) * jnp.sin(dtA_im)
    denom = A_re ** 2 + A_im ** 2
    f_re = (e_re * A_re + e_im * A_im) / denom
    f_im = (e_im * A_re - e_re * A_im) / denom
    Ct_re = C_re * f_re - C_im * f_im
    Ct_im = C_re * f_im + C_im * f_re
    # K[d, l] = 2 * Re( sum_n Ct[d, n] * exp(dtA[d, n] * l) )
    l = jnp.arange(L, dtype=jnp.float32)              # (L,)
    mag = jnp.exp(dtA_re[:, :, None] * l)             # (D, N, L)
    ex_re = mag * jnp.cos(dtA_im[:, :, None] * l)
    ex_im = mag * jnp.sin(dtA_im[:, :, None] * l)
    K = 2.0 * jnp.sum(Ct_re[:, :, None] * ex_re - Ct_im[:, :, None] * ex_im,
                      axis=1)
    return K.astype(jnp.float32)                      # (D, L)


def init_params(key, D, nlayers, d_state=16, dt_min=1e-3, dt_max=1e-1):
    N2 = d_state // 2
    params = []
    for i in range(nlayers):
        ks = jax.random.split(jax.random.fold_in(key, i), 6)
        log_dt = (jax.random.uniform(ks[0], (D,)) *
                  (np.log(dt_max) - np.log(dt_min)) + np.log(dt_min))
        C_re = jax.random.normal(ks[1], (D, N2)) * (0.5 ** 0.5)
        C_im = jax.random.normal(ks[2], (D, N2)) * (0.5 ** 0.5)
        log_A_real = jnp.log(0.5 * jnp.ones((D, N2), jnp.float32))
        A_imag = jnp.pi * jnp.broadcast_to(
            jnp.arange(N2, dtype=jnp.float32), (D, N2))
        dskip = jax.random.normal(ks[3], (D,))
        w = jax.random.normal(ks[4], (D, 2 * D)) / np.sqrt(D)
        b = jax.random.normal(ks[5], (2 * D,)) * 0.01
        params.append(dict(log_dt=log_dt, C_re=C_re, C_im=C_im,
                           log_A_real=log_A_real, A_imag=A_imag,
                           dskip=dskip, w=w, b=b,
                           gamma=jnp.ones((D,), jnp.float32),
                           beta=jnp.zeros((D,), jnp.float32)))
    return params


def s4att_reference(x, params, *, prenorm=True):
    """Pure-JAX reference with identical math (for validation).

    The GLU matmul operands are quantized to bf16 exactly as the kernel does
    (intentional MXU dtype choice), so the comparison isolates kernel bugs
    rather than measuring bf16 quantization error.
    """
    B, L, D = x.shape

    def ln(v, g, be):
        mu = v.mean(-1, keepdims=True)
        var = ((v - mu) ** 2).mean(-1, keepdims=True)
        return (v - mu) / jnp.sqrt(var + 1e-5) * g + be

    for p in params:
        K = s4d_ssm_kernel(p['log_dt'], p['C_re'], p['C_im'],
                           p['log_A_real'], p['A_imag'], L)
        kT = K.T                                            # (L, D)
        z = ln(x, p['gamma'], p['beta']) if prenorm else x
        zp = jnp.pad(z, ((0, 0), (L, 0), (0, 0)))
        y = jnp.zeros_like(z)
        for m in range(L):
            y = y + zp[:, L - m:2 * L - m, :] * kT[m][None, None, :]
        y = y + z * p['dskip'][None, None, :]
        y = jax.nn.gelu(y, approximate=True)
        yb = y.astype(jnp.bfloat16).astype(jnp.float32)
        wb = p['w'].astype(jnp.bfloat16).astype(jnp.float32)
        v = jnp.einsum('bld,de->ble', yb, wb) + p['b'][None, None, :]
        out = v[..., :D] * jax.nn.sigmoid(v[..., D:])
        x = out + x
        if not prenorm:
            x = ln(x, p['gamma'], p['beta'])
    return x


if __name__ == "__main__":
    B, L, D = 2, 16, 32        # batch, seq, repr_dim
    nlayers, prenorm = 2, True  # attender.nlayers, attender.prenorm; dropout=0 (eval)

    key = jax.random.PRNGKey(0)
    kx, kp = jax.random.split(key)
    x = jax.random.normal(kx, (B, L, D), dtype=jnp.float32)
    params = init_params(kp, D, nlayers)

    out = s4att_forward(x, params, prenorm=prenorm)
    out = jax.block_until_ready(out)

    ref = s4att_reference(x, params, prenorm=prenorm)
    assert out.shape == (B, L, D)
    np.testing.assert_allclose(np.asarray(out), np.asarray(ref),
                               rtol=5e-3, atol=5e-3)
    print("KERNEL_OK")
</pallas_src>

<mosaic_0001>
module attributes {stable_mosaic.version = 11 : i64} {
  func.func @s4att_layer_kernel(%arg0: i32, %arg1: i32, %arg2: memref<1x16x32xf32, #tpu.memory_space<vmem>>, %arg3: memref<1x16x32xf32, #tpu.memory_space<vmem>>, %arg4: memref<1x1x32xf32, #tpu.memory_space<vmem>>, %arg5: memref<1x32x32xbf16, #tpu.memory_space<vmem>>, %arg6: memref<1x32x32xbf16, #tpu.memory_space<vmem>>, %arg7: memref<1x1x32xf32, #tpu.memory_space<vmem>>, %arg8: memref<1x1x32xf32, #tpu.memory_space<vmem>>, %arg9: memref<1x1x32xf32, #tpu.memory_space<vmem>>, %arg10: memref<1x1x32xf32, #tpu.memory_space<vmem>>, %arg11: memref<1x16x32xf32, #tpu.memory_space<vmem>>, %arg12: memref<32x32xf32, #tpu.memory_space<vmem>>, %arg13: memref<16x32xf32, #tpu.memory_space<vmem>>) attributes {dimension_semantics = [#tpu.dimension_semantics<parallel>, #tpu.dimension_semantics<arbitrary>], iteration_bounds = array<i64: 2, 2>, scalar_prefetch = 0 : i64, scratch_operands = 2 : i64, tpu.core_type = #tpu.core_type<tc>, window_params = [{transform_indices = @transform_0, window_bounds = array<i64: 1, 16, 32>}, {transform_indices = @transform_1, window_bounds = array<i64: 1, 16, 32>}, {transform_indices = @transform_2, window_bounds = array<i64: 1, 1, 32>}, {transform_indices = @transform_3, window_bounds = array<i64: 1, 32, 32>}, {transform_indices = @transform_4, window_bounds = array<i64: 1, 32, 32>}, {transform_indices = @transform_5, window_bounds = array<i64: 1, 1, 32>}, {transform_indices = @transform_6, window_bounds = array<i64: 1, 1, 32>}, {transform_indices = @transform_7, window_bounds = array<i64: 1, 1, 32>}, {transform_indices = @transform_8, window_bounds = array<i64: 1, 1, 32>}, {transform_indices = @transform_9, window_bounds = array<i64: 1, 16, 32>}]} {
    %c0_i32 = arith.constant 0 : i32
    %0 = arith.cmpi eq, %arg1, %c0_i32 : i32
    %1 = arith.extui %0 : i1 to i32
    %c0_i32_0 = arith.constant 0 : i32
    %2 = arith.cmpi ne, %1, %c0_i32_0 : i32
    scf.if %2 {
      %c0_56 = arith.constant 0 : index
      %c0_57 = arith.constant 0 : index
      %c0_58 = arith.constant 0 : index
      %155 = vector.load %arg2[%c0_56, %c0_57, %c0_58] : memref<1x16x32xf32, #tpu.memory_space<vmem>>, vector<1x16x32xf32>
      %156 = vector.shape_cast %155 : vector<1x16x32xf32> to vector<16x32xf32>
      %c0_59 = arith.constant 0 : index
      %c0_60 = arith.constant 0 : index
      %157 = vector.load %arg13[%c0_59, %c0_60] : memref<16x32xf32, #tpu.memory_space<vmem>>, vector<16x32xf32>
      tpu.vector_store %arg13[%c0_59, %c0_60], %156 {strides = array<i32>} : memref<16x32xf32, #tpu.memory_space<vmem>>, vector<16x32xf32>,
      %cst_61 = arith.constant 0.000000e+00 : f32
      %158 = vector.broadcast %cst_61 : f32 to vector<16x32xf32>
      %c0_62 = arith.constant 0 : index
      %c0_63 = arith.constant 0 : index
      %159 = vector.load %arg12[%c0_62, %c0_63] : memref<32x32xf32, #tpu.memory_space<vmem>>, vector<16x32xf32>
      tpu.vector_store %arg12[%c0_62, %c0_63], %158 {strides = array<i32>} : memref<32x32xf32, #tpu.memory_space<vmem>>, vector<16x32xf32>,
    } else {
    }
    %c0 = arith.constant 0 : index
    %c0_1 = arith.constant 0 : index
    %3 = vector.load %arg13[%c0, %c0_1] : memref<16x32xf32, #tpu.memory_space<vmem>>, vector<16x32xf32>
    %c0_2 = arith.constant 0 : index
    %c0_3 = arith.constant 0 : index
    %c0_4 = arith.constant 0 : index
    %4 = vector.load %arg9[%c0_2, %c0_3, %c0_4] : memref<1x1x32xf32, #tpu.memory_space<vmem>>, vector<1x1x32xf32>
    %5 = vector.shape_cast %4 : vector<1x1x32xf32> to vector<1x32xf32>
    %c0_5 = arith.constant 0 : index
    %c0_6 = arith.constant 0 : index
    %c0_7 = arith.constant 0 : index
    %6 = vector.load %arg10[%c0_5, %c0_6, %c0_7] : memref<1x1x32xf32, #tpu.memory_space<vmem>>, vector<1x1x32xf32>
    %7 = vector.shape_cast %6 : vector<1x1x32xf32> to vector<1x32xf32>
    %cst = arith.constant dense<0.000000e+00> : vector<16xf32>
    %8 = vector.multi_reduction <add>, %3, %cst [1] : vector<16x32xf32> to vector<16xf32>
    %9 = vector.shape_cast %8 : vector<16xf32> to vector<16x1xf32>
    %cst_8 = arith.constant 3.200000e+01 : f32
    %10 = vector.broadcast %cst_8 : f32 to vector<16x1xf32>
    %11 = arith.divf %9, %10 : vector<16x1xf32>
    %12 = vector.broadcast %11 : vector<16x1xf32> to vector<16x32xf32>
    %13 = arith.subf %3, %12 : vector<16x32xf32>
    %14 = arith.mulf %13, %13 : vector<16x32xf32>
    %cst_9 = arith.constant dense<0.000000e+00> : vector<16xf32>
    %15 = vector.multi_reduction <add>, %14, %cst_9 [1] : vector<16x32xf32> to vector<16xf32>
    %16 = vector.shape_cast %15 : vector<16xf32> to vector<16x1xf32>
    %cst_10 = arith.constant 3.200000e+01 : f32
    %17 = vector.broadcast %cst_10 : f32 to vector<16x1xf32>
    %18 = arith.divf %16, %17 : vector<16x1xf32>
    %19 = vector.broadcast %11 : vector<16x1xf32> to vector<16x32xf32>
    %20 = arith.subf %3, %19 : vector<16x32xf32>
    %cst_11 = arith.constant 9.99999974E-6 : f32
    %21 = vector.broadcast %cst_11 : f32 to vector<16x1xf32>
    %22 = arith.addf %18, %21 : vector<16x1xf32>
    %23 = math.rsqrt %22 : vector<16x1xf32>
    %24 = vector.broadcast %23 : vector<16x1xf32> to vector<16x32xf32>
    %25 = arith.mulf %20, %24 : vector<16x32xf32>
    %26 = vector.broadcast %5 : vector<1x32xf32> to vector<16x32xf32>
    %27 = arith.mulf %25, %26 : vector<16x32xf32>
    %28 = vector.broadcast %7 : vector<1x32xf32> to vector<16x32xf32>
    %29 = arith.addf %27, %28 : vector<16x32xf32>
    %c16 = arith.constant 16 : index
    %c0_12 = arith.constant 0 : index
    %30 = vector.load %arg12[%c16, %c0_12] : memref<32x32xf32, #tpu.memory_space<vmem>>, vector<16x32xf32>
    tpu.vector_store %arg12[%c16, %c0_12], %29 {strides = array<i32>} : memref<32x32xf32, #tpu.memory_space<vmem>>, vector<16x32xf32>,
    %c0_13 = arith.constant 0 : index
    %c0_14 = arith.constant 0 : index
    %c0_15 = arith.constant 0 : index
    %31 = vector.load %arg3[%c0_13, %c0_14, %c0_15] : memref<1x16x32xf32, #tpu.memory_space<vmem>>, vector<1x16x32xf32>
    %32 = vector.shape_cast %31 : vector<1x16x32xf32> to vector<16x32xf32>
    %33 = vector.extract_strided_slice %32 {offsets = [0, 0], sizes = [1, 32], strides = [1, 1]} : vector<16x32xf32> to vector<1x32xf32>
    %34 = vector.broadcast %33 : vector<1x32xf32> to vector<16x32xf32>
    %35 = arith.mulf %29, %34 : vector<16x32xf32>
    %c15 = arith.constant 15 : index
    %c0_16 = arith.constant 0 : index
    %36 = vector.load %arg12[%c15, %c0_16] : memref<32x32xf32, #tpu.memory_space<vmem>>, vector<16x32xf32>
    %37 = vector.extract_strided_slice %32 {offsets = [1, 0], sizes = [1, 32], strides = [1, 1]} : vector<16x32xf32> to vector<1x32xf32>
    %38 = vector.broadcast %37 : vector<1x32xf32> to vector<16x32xf32>
    %39 = arith.mulf %36, %38 : vector<16x32xf32>
    %40 = arith.addf %35, %39 : vector<16x32xf32>
    %c14 = arith.constant 14 : index
    %c0_17 = arith.constant 0 : index
    %41 = vector.load %arg12[%c14, %c0_17] : memref<32x32xf32, #tpu.memory_space<vmem>>, vector<16x32xf32>
    %42 = vector.extract_strided_slice %32 {offsets = [2, 0], sizes = [1, 32], strides = [1, 1]} : vector<16x32xf32> to vector<1x32xf32>
    %43 = vector.broadcast %42 : vector<1x32xf32> to vector<16x32xf32>
    %44 = arith.mulf %41, %43 : vector<16x32xf32>
    %45 = arith.addf %40, %44 : vector<16x32xf32>
    %c13 = arith.constant 13 : index
    %c0_18 = arith.constant 0 : index
    %46 = vector.load %arg12[%c13, %c0_18] : memref<32x32xf32, #tpu.memory_space<vmem>>, vector<16x32xf32>
    %47 = vector.extract_strided_slice %32 {offsets = [3, 0], sizes = [1, 32], strides = [1, 1]} : vector<16x32xf32> to vector<1x32xf32>
    %48 = vector.broadcast %47 : vector<1x32xf32> to vector<16x32xf32>
    %49 = arith.mulf %46, %48 : vector<16x32xf32>
    %50 = arith.addf %45, %49 : vector<16x32xf32>
    %c12 = arith.constant 12 : index
    %c0_19 = arith.constant 0 : index
    %51 = vector.load %arg12[%c12, %c0_19] : memref<32x32xf32, #tpu.memory_space<vmem>>, vector<16x32xf32>
    %52 = vector.extract_strided_slice %32 {offsets = [4, 0], sizes = [1, 32], strides = [1, 1]} : vector<16x32xf32> to vector<1x32xf32>
    %53 = vector.broadcast %52 : vector<1x32xf32> to vector<16x32xf32>
    %54 = arith.mulf %51, %53 : vector<16x32xf32>
    %55 = arith.addf %50, %54 : vector<16x32xf32>
    %c11 = arith.constant 11 : index
    %c0_20 = arith.constant 0 : index
    %56 = vector.load %arg12[%c11, %c0_20] : memref<32x32xf32, #tpu.memory_space<vmem>>, vector<16x32xf32>
    %57 = vector.extract_strided_slice %32 {offsets = [5, 0], sizes = [1, 32], strides = [1, 1]} : vector<16x32xf32> to vector<1x32xf32>
    %58 = vector.broadcast %57 : vector<1x32xf32> to vector<16x32xf32>
    %59 = arith.mulf %56, %58 : vector<16x32xf32>
    %60 = arith.addf %55, %59 : vector<16x32xf32>
    %c10 = arith.constant 10 : index
    %c0_21 = arith.constant 0 : index
    %61 = vector.load %arg12[%c10, %c0_21] : memref<32x32xf32, #tpu.memory_space<vmem>>, vector<16x32xf32>
    %62 = vector.extract_strided_slice %32 {offsets = [6, 0], sizes = [1, 32], strides = [1, 1]} : vector<16x32xf32> to vector<1x32xf32>
    %63 = vector.broadcast %62 : vector<1x32xf32> to vector<16x32xf32>
    %64 = arith.mulf %61, %63 : vector<16x32xf32>
    %65 = arith.addf %60, %64 : vector<16x32xf32>
    %c9 = arith.constant 9 : index
    %c0_22 = arith.constant 0 : index
    %66 = vector.load %arg12[%c9, %c0_22] : memref<32x32xf32, #tpu.memory_space<vmem>>, vector<16x32xf32>
    %67 = vector.extract_strided_slice %32 {offsets = [7, 0], sizes = [1, 32], strides = [1, 1]} : vector<16x32xf32> to vector<1x32xf32>
    %68 = vector.broadcast %67 : vector<1x32xf32> to vector<16x32xf32>
    %69 = arith.mulf %66, %68 : vector<16x32xf32>
    %70 = arith.addf %65, %69 : vector<16x32xf32>
    %c8 = arith.constant 8 : index
    %c0_23 = arith.constant 0 : index
    %71 = vector.load %arg12[%c8, %c0_23] : memref<32x32xf32, #tpu.memory_space<vmem>>, vector<16x32xf32>
    %72 = vector.extract_strided_slice %32 {offsets = [8, 0], sizes = [1, 32], strides = [1, 1]} : vector<16x32xf32> to vector<1x32xf32>
    %73 = vector.broadcast %72 : vector<1x32xf32> to vector<16x32xf32>
    %74 = arith.mulf %71, %73 : vector<16x32xf32>
    %75 = arith.addf %70, %74 : vector<16x32xf32>
    %c7 = arith.constant 7 : index
    %c0_24 = arith.constant 0 : index
    %76 = vector.load %arg12[%c7, %c0_24] : memref<32x32xf32, #tpu.memory_space<vmem>>, vector<16x32xf32>
    %77 = vector.extract_strided_slice %32 {offsets = [9, 0], sizes = [1, 32], strides = [1, 1]} : vector<16x32xf32> to vector<1x32xf32>
    %78 = vector.broadcast %77 : vector<1x32xf32> to vector<16x32xf32>
    %79 = arith.mulf %76, %78 : vector<16x32xf32>
    %80 = arith.addf %75, %79 : vector<16x32xf32>
    %c6 = arith.constant 6 : index
    %c0_25 = arith.constant 0 : index
    %81 = vector.load %arg12[%c6, %c0_25] : memref<32x32xf32, #tpu.memory_space<vmem>>, vector<16x32xf32>
    %82 = vector.extract_strided_slice %32 {offsets = [10, 0], sizes = [1, 32], strides = [1, 1]} : vector<16x32xf32> to vector<1x32xf32>
    %83 = vector.broadcast %82 : vector<1x32xf32> to vector<16x32xf32>
    %84 = arith.mulf %81, %83 : vector<16x32xf32>
    %85 = arith.addf %80, %84 : vector<16x32xf32>
    %c5 = arith.constant 5 : index
    %c0_26 = arith.constant 0 : index
    %86 = vector.load %arg12[%c5, %c0_26] : memref<32x32xf32, #tpu.memory_space<vmem>>, vector<16x32xf32>
    %87 = vector.extract_strided_slice %32 {offsets = [11, 0], sizes = [1, 32], strides = [1, 1]} : vector<16x32xf32> to vector<1x32xf32>
    %88 = vector.broadcast %87 : vector<1x32xf32> to vector<16x32xf32>
    %89 = arith.mulf %86, %88 : vector<16x32xf32>
    %90 = arith.addf %85, %89 : vector<16x32xf32>
    %c4 = arith.constant 4 : index
    %c0_27 = arith.constant 0 : index
    %91 = vector.load %arg12[%c4, %c0_27] : memref<32x32xf32, #tpu.memory_space<vmem>>, vector<16x32xf32>
    %92 = vector.extract_strided_slice %32 {offsets = [12, 0], sizes = [1, 32], strides = [1, 1]} : vector<16x32xf32> to vector<1x32xf32>
    %93 = vector.broadcast %92 : vector<1x32xf32> to vector<16x32xf32>
    %94 = arith.mulf %91, %93 : vector<16x32xf32>
    %95 = arith.addf %90, %94 : vector<16x32xf32>
    %c3 = arith.constant 3 : index
    %c0_28 = arith.constant 0 : index
    %96 = vector.load %arg12[%c3, %c0_28] : memref<32x32xf32, #tpu.memory_space<vmem>>, vector<16x32xf32>
    %97 = vector.extract_strided_slice %32 {offsets = [13, 0], sizes = [1, 32], strides = [1, 1]} : vector<16x32xf32> to vector<1x32xf32>
    %98 = vector.broadcast %97 : vector<1x32xf32> to vector<16x32xf32>
    %99 = arith.mulf %96, %98 : vector<16x32xf32>
    %100 = arith.addf %95, %99 : vector<16x32xf32>
    %c2 = arith.constant 2 : index
    %c0_29 = arith.constant 0 : index
    %101 = vector.load %arg12[%c2, %c0_29] : memref<32x32xf32, #tpu.memory_space<vmem>>, vector<16x32xf32>
    %102 = vector.extract_strided_slice %32 {offsets = [14, 0], sizes = [1, 32], strides = [1, 1]} : vector<16x32xf32> to vector<1x32xf32>
    %103 = vector.broadcast %102 : vector<1x32xf32> to vector<16x32xf32>
    %104 = arith.mulf %101, %103 : vector<16x32xf32>
    %105 = arith.addf %100, %104 : vector<16x32xf32>
    %c1 = arith.constant 1 : index
    %c0_30 = arith.constant 0 : index
    %106 = vector.load %arg12[%c1, %c0_30] : memref<32x32xf32, #tpu.memory_space<vmem>>, vector<16x32xf32>
    %107 = vector.extract_strided_slice %32 {offsets = [15, 0], sizes = [1, 32], strides = [1, 1]} : vector<16x32xf32> to vector<1x32xf32>
    %108 = vector.broadcast %107 : vector<1x32xf32> to vector<16x32xf32>
    %109 = arith.mulf %106, %108 : vector<16x32xf32>
    %110 = arith.addf %105, %109 : vector<16x32xf32>
    %c0_31 = arith.constant 0 : index
    %c0_32 = arith.constant 0 : index
    %c0_33 = arith.constant 0 : index
    %111 = vector.load %arg4[%c0_31, %c0_32, %c0_33] : memref<1x1x32xf32, #tpu.memory_space<vmem>>, vector<1x1x32xf32>
    %112 = vector.shape_cast %111 : vector<1x1x32xf32> to vector<1x32xf32>
    %113 = vector.broadcast %112 : vector<1x32xf32> to vector<16x32xf32>
    %114 = arith.mulf %29, %113 : vector<16x32xf32>
    %115 = arith.addf %110, %114 : vector<16x32xf32>
    %116 = arith.mulf %115, %115 : vector<16x32xf32>
    %117 = arith.mulf %115, %116 : vector<16x32xf32>
    %cst_34 = arith.constant 4.471500e-02 : f32
    %118 = vector.broadcast %cst_34 : f32 to vector<16x32xf32>
    %119 = arith.mulf %118, %117 : vector<16x32xf32>
    %120 = arith.addf %115, %119 : vector<16x32xf32>
    %cst_35 = arith.constant 0.797884583 : f32
    %121 = vector.broadcast %cst_35 : f32 to vector<16x32xf32>
    %122 = arith.mulf %121, %120 : vector<16x32xf32>
    %123 = math.tanh %122 : vector<16x32xf32>
    %cst_36 = arith.constant 1.000000e+00 : f32
    %124 = vector.broadcast %cst_36 : f32 to vector<16x32xf32>
    %125 = arith.addf %124, %123 : vector<16x32xf32>
    %cst_37 = arith.constant 5.000000e-01 : f32
    %126 = vector.broadcast %cst_37 : f32 to vector<16x32xf32>
    %127 = arith.mulf %126, %125 : vector<16x32xf32>
    %128 = arith.mulf %115, %127 : vector<16x32xf32>
    %129 = arith.truncf %128 : vector<16x32xf32> to vector<16x32xbf16>
    %c0_38 = arith.constant 0 : index
    %c0_39 = arith.constant 0 : index
    %c0_40 = arith.constant 0 : index
    %130 = vector.load %arg5[%c0_38, %c0_39, %c0_40] : memref<1x32x32xbf16, #tpu.memory_space<vmem>>, vector<1x32x32xbf16>
    %131 = vector.shape_cast %130 : vector<1x32x32xbf16> to vector<32x32xbf16>
    %cst_41 = arith.constant dense<0.000000e+00> : vector<16x32xf32>
    %132 = tpu.matmul %129, %131, %cst_41 {dimension_numbers = #tpu.dot_dimension_numbers<[1], [0], [0], [1], [0, 0, 1, 1], [], []>} : vector<16x32xbf16>, vector<32x32xbf16>, vector<16x32xf32> -> vector<16x32xf32>
    %c0_42 = arith.constant 0 : index
    %c0_43 = arith.constant 0 : index
    %c0_44 = arith.constant 0 : index
    %133 = vector.load %arg7[%c0_42, %c0_43, %c0_44] : memref<1x1x32xf32, #tpu.memory_space<vmem>>, vector<1x1x32xf32>
    %134 = vector.shape_cast %133 : vector<1x1x32xf32> to vector<1x32xf32>
    %135 = vector.broadcast %134 : vector<1x32xf32> to vector<16x32xf32>
    %136 = arith.addf %132, %135 : vector<16x32xf32>
    %c0_45 = arith.constant 0 : index
    %c0_46 = arith.constant 0 : index
    %c0_47 = arith.constant 0 : index
    %137 = vector.load %arg6[%c0_45, %c0_46, %c0_47] : memref<1x32x32xbf16, #tpu.memory_space<vmem>>, vector<1x32x32xbf16>
    %138 = vector.shape_cast %137 : vector<1x32x32xbf16> to vector<32x32xbf16>
    %cst_48 = arith.constant dense<0.000000e+00> : vector<16x32xf32>
    %139 = tpu.matmul %129, %138, %cst_48 {dimension_numbers = #tpu.dot_dimension_numbers<[1], [0], [0], [1], [0, 0, 1, 1], [], []>} : vector<16x32xbf16>, vector<32x32xbf16>, vector<16x32xf32> -> vector<16x32xf32>
    %c0_49 = arith.constant 0 : index
    %c0_50 = arith.constant 0 : index
    %c0_51 = arith.constant 0 : index
    %140 = vector.load %arg8[%c0_49, %c0_50, %c0_51] : memref<1x1x32xf32, #tpu.memory_space<vmem>>, vector<1x1x32xf32>
    %141 = vector.shape_cast %140 : vector<1x1x32xf32> to vector<1x32xf32>
    %142 = vector.broadcast %141 : vector<1x32xf32> to vector<16x32xf32>
    %143 = arith.addf %139, %142 : vector<16x32xf32>
    %144 = arith.negf %143 : vector<16x32xf32>
    %145 = math.exp %144 : vector<16x32xf32>
    %cst_52 = arith.constant 1.000000e+00 : f32
    %146 = vector.broadcast %cst_52 : f32 to vector<16x32xf32>
    %147 = arith.addf %146, %145 : vector<16x32xf32>
    %148 = arith.divf %146, %147 : vector<16x32xf32>
    %149 = arith.mulf %136, %148 : vector<16x32xf32>
    %150 = arith.addf %149, %3 : vector<16x32xf32>
    %c0_53 = arith.constant 0 : index
    %c0_54 = arith.constant 0 : index
    %151 = vector.load %arg13[%c0_53, %c0_54] : memref<16x32xf32, #tpu.memory_space<vmem>>, vector<16x32xf32>
    tpu.vector_store %arg13[%c0_53, %c0_54], %150 {strides = array<i32>} : memref<16x32xf32, #tpu.memory_space<vmem>>, vector<16x32xf32>,
    %c1_i32 = arith.constant 1 : i32
    %152 = arith.cmpi eq, %arg1, %c1_i32 : i32
    %153 = arith.extui %152 : i1 to i32
    %c0_i32_55 = arith.constant 0 : i32
    %154 = arith.cmpi ne, %153, %c0_i32_55 : i32
    scf.if %154 {
      %c0_56 = arith.constant 0 : index
      %c0_57 = arith.constant 0 : index
      %155 = vector.load %arg13[%c0_56, %c0_57] : memref<16x32xf32, #tpu.memory_space<vmem>>, vector<16x32xf32>
      %c0_58 = arith.constant 0 : index
      %c0_59 = arith.constant 0 : index
      %c0_60 = arith.constant 0 : index
      %156 = vector.load %arg11[%c0_58, %c0_59, %c0_60] : memref<1x16x32xf32, #tpu.memory_space<vmem>>, vector<1x16x32xf32>
      %157 = vector.shape_cast %156 : vector<1x16x32xf32> to vector<16x32xf32>
      %158 = vector.shape_cast %155 : vector<16x32xf32> to vector<1x16x32xf32>
      tpu.vector_store %arg11[%c0_58, %c0_59, %c0_60], %158 {strides = array<i32>} : memref<1x16x32xf32, #tpu.memory_space<vmem>>, vector<1x16x32xf32>,
    } else {
    }
    return
  }
  func.func @transform_0(%arg0: i32, %arg1: i32) -> (i32, i32, i32) {
    %c0_i32 = arith.constant 0 : i32
    %c0_i32_0 = arith.constant 0 : i32
    %c0_i32_1 = arith.constant 0 : i32
    return %arg0, %c0_i32, %c0_i32_0 : i32, i32, i32
  }
  func.func @transform_1(%arg0: i32, %arg1: i32) -> (i32, i32, i32) {
    %c0_i32 = arith.constant 0 : i32
    %c0_i32_0 = arith.constant 0 : i32
    %c0_i32_1 = arith.constant 0 : i32
    return %arg1, %c0_i32, %c0_i32_0 : i32, i32, i32
  }
  func.func @transform_2(%arg0: i32, %arg1: i32) -> (i32, i32, i32) {
    %c0_i32 = arith.constant 0 : i32
    %c0_i32_0 = arith.constant 0 : i32
    %c0_i32_1 = arith.constant 0 : i32
    return %arg1, %c0_i32, %c0_i32_0 : i32, i32, i32
  }
  func.func @transform_3(%arg0: i32, %arg1: i32) -> (i32, i32, i32) {
    %c0_i32 = arith.constant 0 : i32
    %c0_i32_0 = arith.constant 0 : i32
    %c0_i32_1 = arith.constant 0 : i32
    return %arg1, %c0_i32, %c0_i32_0 : i32, i32, i32
  }
  func.func @transform_4(%arg0: i32, %arg1: i32) -> (i32, i32, i32) {
    %c0_i32 = arith.constant 0 : i32
    %c0_i32_0 = arith.constant 0 : i32
    %c0_i32_1 = arith.constant 0 : i32
    return %arg1, %c0_i32, %c0_i32_0 : i32, i32, i32
  }
  func.func @transform_5(%arg0: i32, %arg1: i32) -> (i32, i32, i32) {
    %c0_i32 = arith.constant 0 : i32
    %c0_i32_0 = arith.constant 0 : i32
    %c0_i32_1 = arith.constant 0 : i32
    return %arg1, %c0_i32, %c0_i32_0 : i32, i32, i32
  }
  func.func @transform_6(%arg0: i32, %arg1: i32) -> (i32, i32, i32) {
    %c0_i32 = arith.constant 0 : i32
    %c0_i32_0 = arith.constant 0 : i32
    %c0_i32_1 = arith.constant 0 : i32
    return %arg1, %c0_i32, %c0_i32_0 : i32, i32, i32
  }
  func.func @transform_7(%arg0: i32, %arg1: i32) -> (i32, i32, i32) {
    %c0_i32 = arith.constant 0 : i32
    %c0_i32_0 = arith.constant 0 : i32
    %c0_i32_1 = arith.constant 0 : i32
    return %arg1, %c0_i32, %c0_i32_0 : i32, i32, i32
  }
  func.func @transform_8(%arg0: i32, %arg1: i32) -> (i32, i32, i32) {
    %c0_i32 = arith.constant 0 : i32
    %c0_i32_0 = arith.constant 0 : i32
    %c0_i32_1 = arith.constant 0 : i32
    return %arg1, %c0_i32, %c0_i32_0 : i32, i32, i32
  }
  func.func @transform_9(%arg0: i32, %arg1: i32) -> (i32, i32, i32) {
    %c0_i32 = arith.constant 0 : i32
    %c0_i32_0 = arith.constant 0 : i32
    %c0_i32_1 = arith.constant 0 : i32
    return %arg0, %c0_i32, %c0_i32_0 : i32, i32, i32
  }
}

</mosaic_0001>

<llo_original>
// kernel: tpu_custom_call.1
$region0: #{tpu_custom_call.1}
  #allocation0 [shape = 'u32[]', space=smem, size = 0x4, offset = 0x4, fixed_abs, tag = 'smem constant byte address 0x4 - core index']
  #allocation1 [shape = 'u32[144,128]{1,0:T(1,128)}', space=vmem, size = 0x12000, scoped, tag = 'internal scratch']
  #allocation2 [shape = 'f32[32,32]{1,0:T(8,128)}', space=vmem, size = 0x4000, scoped, tag = 'scratch operand']
  #allocation3 [shape = 'f32[16,32]{1,0:T(8,128)}', space=vmem, size = 0x2000, scoped, tag = 'scratch operand']
  %s0 = inlined_call_operand.hbm [shape: f32[2,16,32], index: 0, kind: input, shape index: {}]
  %s1 = inlined_call_operand.hbm [shape: f32[2,16,32], index: 1, kind: input, shape index: {}]
  %s2 = inlined_call_operand.vmem [shape: f32[2,1,32], index: 2, kind: input, shape index: {}]
  %s3 = inlined_call_operand.hbm [shape: bf16[2,32,32], index: 3, kind: input, shape index: {}]
  %s4 = inlined_call_operand.hbm [shape: bf16[2,32,32], index: 4, kind: input, shape index: {}]
  %s5 = inlined_call_operand.vmem [shape: f32[2,1,32], index: 5, kind: input, shape index: {}]
  %s6 = inlined_call_operand.vmem [shape: f32[2,1,32], index: 6, kind: input, shape index: {}]
  %s7 = inlined_call_operand.vmem [shape: f32[2,1,32], index: 7, kind: input, shape index: {}]
  %s8 = inlined_call_operand.vmem [shape: f32[2,1,32], index: 8, kind: input, shape index: {}]
  %s9 = inlined_call_operand.hbm [shape: f32[2,16,32], index: 9, kind: output, shape index: {}]
  %s10 = sld [smem:[#allocation0]]
  $region93: #{tpu_custom_call.1} parent=0
    _
  %s12 = ssub.s32 1, %s10
  %s13 = scalar_select 0, %s12, %s10
  $region1: #{tpu_custom_call.1} parent=0
    #allocation4 [shape = 'u8[16384]{0}', space=vmem, size = 0x4000, scoped, tag = 'input window, operand 0']
    #allocation5 [shape = 's32[2]{0}', space=sflag, size = 0x8, scoped, tag = 'scoped memory for tpu_custom_call.1']
    #allocation6 [shape = 's32[2]{0}', space=sflag, size = 0x8, scoped, tag = 'scoped memory for tpu_custom_call.1']
    #allocation7 [shape = 'u8[16384]{0}', space=vmem, size = 0x4000, scoped, tag = 'input window, operand 1']
    #allocation8 [shape = 's32[2]{0}', space=sflag, size = 0x8, scoped, tag = 'scoped memory for tpu_custom_call.1']
    #allocation9 [shape = 'u8[16384]{0}', space=vmem, size = 0x4000, scoped, tag = 'input window, operand 3']
    #allocation10 [shape = 'u8[16384]{0}', space=vmem, size = 0x4000, scoped, tag = 'input window, operand 4']
    #allocation11 [shape = 's32[2]{0}', space=sflag, size = 0x8, scoped, tag = 'scoped memory for tpu_custom_call.1']
    #allocation12 [shape = 'u8[16384]{0}', space=vmem, size = 0x4000, scoped, tag = 'output window, operand 0']
    %14 = vsyncpa [#allocation5], 0
    %s15 = scalar_lea.sflag [#allocation5], 1
    %16 = vsyncpa %s15, 0
    %17 = vsyncpa [#allocation8], 0
    %s18 = scalar_lea.sflag [#allocation8], 1
    %19 = vsyncpa %s18, 0
    %20 = vsyncpa [#allocation11], 0
    %s21 = scalar_lea.sflag [#allocation11], 1
    %22 = vsyncpa %s21, 0
    %23 = vsyncpa [#allocation6], 0
    %s24 = scalar_lea.sflag [#allocation6], 1
    %25 = vsyncpa %s24, 0
    loop: start=0, step=1, limit=6
    $region2: #{tpu_custom_call.1} parent=1 // loop_pre_header
      _
    $region3: #{tpu_custom_call.1} parent=1 // loop_header
      %s27 = sphi 0, %s31
      %p28 = scmp.ge.s32.totalorder %s27, 6
      %s34 = sphi 0, %s46
      %s35 = sphi 0, %s42
      %s36 = sphi 0, %s34
      %s37 = sphi 0, %s35
      %s38 = sphi 0, %s36
      %s39 = sphi 0, %s37
      %s49 = sphi 0, %s51
      %s52 = sphi 0, %s49
      %s53 = sphi 0, %s52
      %s69 = sphi 0, %s53
      %s75 = sphi 0, %s77
      %s78 = sphi 0, %s75
      %s79 = sphi 0, %s78
      %s95 = sphi 0, %s79
      %s101 = sphi 0, %s103
      %s104 = sphi 0, %s101
      %s105 = sphi 0, %s104
      %s121 = sphi 0, %s105
      %s127 = sphi 0, %s129
      %s130 = sphi 0, %s127
      %s131 = sphi 0, %s130
      %s147 = sphi 0, %s131
      %s153 = sphi 0, %s155
      %s156 = sphi 0, %s153
      %s157 = sphi 0, %s156
      %s173 = sphi 0, %s157
      %s179 = sphi 0, %s181
      %s182 = sphi 0, %s179
      %s183 = sphi 0, %s182
      %s199 = sphi 0, %s183
      %s205 = sphi 0, %s207
      %s208 = sphi 0, %s205
      %s209 = sphi 0, %s208
      %s225 = sphi 0, %s209
      %s231 = sphi 0, %s233
      %s234 = sphi 0, %s231
      %s235 = sphi 0, %s234
      %s251 = sphi 0, %s235
      %s257 = sphi 0, %s259
      %s260 = sphi 0, %s257
      %s261 = sphi 0, %s260
      %s277 = sphi 0, %s261
      %s283 = sphi 0, %s285
      %s286 = sphi 0, %s283
      %s287 = sphi 0, %s286
      %s303 = sphi 0, %s287
    $region4: #{tpu_custom_call.1} parent=1 // loop_header_branch
      %30 = sbr.rel (%p28) target = $region8
    $region5: #{tpu_custom_call.1} parent=1 // loop_body
      %s32 = ssub.s32 %s27, 1
      %s33 = ssub.s32 %s27, 2
      %s40 = sadd.s32 1, %s35
      %p41 = scmp.ge.s32.totalorder %s40, 2
      %s42 = scalar_select %p41, 0, %s40
      %s43 = sadd.s32 1, %s34
      %s44 = scalar_select %p41, %s43, %s34
      %p45 = scmp.ge.s32.totalorder %s44, 2
      %s46 = scalar_select %p45, 0, %s44
      %s47 = ssub.s32 %s34, %s46
      %p48 = scmp.eq.s32.totalorder %s47, 0
      %s50 = sadd.s32 %s49, 1
      %s51 = scalar_select %p48, %s49, %s50
      %p54 = pneg %p48
      %p55 = scmp.eq.s32.totalorder %s27, 3
      %p56 = por %p54, %p55
      %p57 = scmp.ne.s32.totalorder %s49, %s52
      %p58 = scmp.eq.s32.totalorder %s27, 0
      %p59 = por %p57, %p58
      %p60 = scmp.ne.s32.totalorder %s49, %s52
      %p61 = scmp.eq.s32.totalorder %s32, 3
      %p62 = por %p60, %p61
      %p63 = scmp.ne.s32.totalorder %s52, %s53
      %p64 = scmp.eq.s32.totalorder %s32, 0
      %p65 = por %p63, %p64
      %p66 = scmp.ne.s32.totalorder %s52, %s53
      %p67 = scmp.eq.s32.totalorder %s33, 3
      %p68 = por %p66, %p67
      %p70 = scmp.ne.s32.totalorder %s53, %s69
      %p71 = scmp.eq.s32.totalorder %s33, 0
      %p72 = por %p70, %p71
      %s73 = ssub.s32 %s35, %s42
      %p74 = scmp.eq.s32.totalorder %s73, 0
      %s76 = sadd.s32 %s75, 1
      %s77 = scalar_select %p74, %s75, %s76
      %p80 = pneg %p74
      %p81 = scmp.eq.s32.totalorder %s27, 3
      %p82 = por %p80, %p81
      %p83 = scmp.ne.s32.totalorder %s75, %s78
      %p84 = scmp.eq.s32.totalorder %s27, 0
      %p85 = por %p83, %p84
      %p86 = scmp.ne.s32.totalorder %s75, %s78
      %p87 = scmp.eq.s32.totalorder %s32, 3
      %p88 = por %p86, %p87
      %p89 = scmp.ne.s32.totalorder %s78, %s79
      %p90 = scmp.eq.s32.totalorder %s32, 0
      %p91 = por %p89, %p90
      %p92 = scmp.ne.s32.totalorder %s78, %s79
      %p93 = scmp.eq.s32.totalorder %s33, 3
      %p94 = por %p92, %p93
      %p96 = scmp.ne.s32.totalorder %s79, %s95
      %p97 = scmp.eq.s32.totalorder %s33, 0
      %p98 = por %p96, %p97
      %s99 = ssub.s32 %s35, %s42
      %p100 = scmp.eq.s32.totalorder %s99, 0
      %s102 = sadd.s32 %s101, 1
      %s103 = scalar_select %p100, %s101, %s102
      %p106 = pneg %p100
      %p107 = scmp.eq.s32.totalorder %s27, 3
      %p108 = por %p106, %p107
      %p109 = scmp.ne.s32.totalorder %s101, %s104
      %p110 = scmp.eq.s32.totalorder %s27, 0
      %p111 = por %p109, %p110
      %p112 = scmp.ne.s32.totalorder %s101, %s104
      %p113 = scmp.eq.s32.totalorder %s32, 3
      %p114 = por %p112, %p113
      %p115 = scmp.ne.s32.totalorder %s104, %s105
      %p116 = scmp.eq.s32.totalorder %s32, 0
      %p117 = por %p115, %p116
      %p118 = scmp.ne.s32.totalorder %s104, %s105
      %p119 = scmp.eq.s32.totalorder %s33, 3
      %p120 = por %p118, %p119
      %p122 = scmp.ne.s32.totalorder %s105, %s121
      %p123 = scmp.eq.s32.totalorder %s33, 0
      %p124 = por %p122, %p123
      %s125 = ssub.s32 %s35, %s42
      %p126 = scmp.eq.s32.totalorder %s125, 0
      %s128 = sadd.s32 %s127, 1
      %s129 = scalar_select %p126, %s127, %s128
      %p132 = pneg %p126
      %p133 = scmp.eq.s32.totalorder %s27, 3
      %p134 = por %p132, %p133
      %p135 = scmp.ne.s32.totalorder %s127, %s130
      %p136 = scmp.eq.s32.totalorder %s27, 0
      %p137 = por %p135, %p136
      %p138 = scmp.ne.s32.totalorder %s127, %s130
      %p139 = scmp.eq.s32.totalorder %s32, 3
      %p140 = por %p138, %p139
      %p141 = scmp.ne.s32.totalorder %s130, %s131
      %p142 = scmp.eq.s32.totalorder %s32, 0
      %p143 = por %p141, %p142
      %p144 = scmp.ne.s32.totalorder %s130, %s131
      %p145 = scmp.eq.s32.totalorder %s33, 3
      %p146 = por %p144, %p145
      %p148 = scmp.ne.s32.totalorder %s131, %s147
      %p149 = scmp.eq.s32.totalorder %s33, 0
      %p150 = por %p148, %p149
      %s151 = ssub.s32 %s35, %s42
      %p152 = scmp.eq.s32.totalorder %s151, 0
      %s154 = sadd.s32 %s153, 1
      %s155 = scalar_select %p152, %s153, %s154
      %p158 = pneg %p152
      %p159 = scmp.eq.s32.totalorder %s27, 3
      %p160 = por %p158, %p159
      %p161 = scmp.ne.s32.totalorder %s153, %s156
      %p162 = scmp.eq.s32.totalorder %s27, 0
      %p163 = por %p161, %p162
      %p164 = scmp.ne.s32.totalorder %s153, %s156
      %p165 = scmp.eq.s32.totalorder %s32, 3
      %p166 = por %p164, %p165
      %p167 = scmp.ne.s32.totalorder %s156, %s157
      %p168 = scmp.eq.s32.totalorder %s32, 0
      %p169 = por %p167, %p168
      %p170 = scmp.ne.s32.totalorder %s156, %s157
      %p171 = scmp.eq.s32.totalorder %s33, 3
      %p172 = por %p170, %p171
      %p174 = scmp.ne.s32.totalorder %s157, %s173
      %p175 = scmp.eq.s32.totalorder %s33, 0
      %p176 = por %p174, %p175
      %s177 = ssub.s32 %s35, %s42
      %p178 = scmp.eq.s32.totalorder %s177, 0
      %s180 = sadd.s32 %s179, 1
      %s181 = scalar_select %p178, %s179, %s180
      %p184 = pneg %p178
      %p185 = scmp.eq.s32.totalorder %s27, 3
      %p186 = por %p184, %p185
      %p187 = scmp.ne.s32.totalorder %s179, %s182
      %p188 = scmp.eq.s32.totalorder %s27, 0
      %p189 = por %p187, %p188
      %p190 = scmp.ne.s32.totalorder %s179, %s182
      %p191 = scmp.eq.s32.totalorder %s32, 3
      %p192 = por %p190, %p191
      %p193 = scmp.ne.s32.totalorder %s182, %s183
      %p194 = scmp.eq.s32.totalorder %s32, 0
      %p195 = por %p193, %p194
      %p196 = scmp.ne.s32.totalorder %s182, %s183
      %p197 = scmp.eq.s32.totalorder %s33, 3
      %p198 = por %p196, %p197
      %p200 = scmp.ne.s32.totalorder %s183, %s199
      %p201 = scmp.eq.s32.totalorder %s33, 0
      %p202 = por %p200, %p201
      %s203 = ssub.s32 %s35, %s42
      %p204 = scmp.eq.s32.totalorder %s203, 0
      %s206 = sadd.s32 %s205, 1
      %s207 = scalar_select %p204, %s205, %s206
      %p210 = pneg %p204
      %p211 = scmp.eq.s32.totalorder %s27, 3
      %p212 = por %p210, %p211
      %p213 = scmp.ne.s32.totalorder %s205, %s208
      %p214 = scmp.eq.s32.totalorder %s27, 0
      %p215 = por %p213, %p214
      %p216 = scmp.ne.s32.totalorder %s205, %s208
      %p217 = scmp.eq.s32.totalorder %s32, 3
      %p218 = por %p216, %p217
      %p219 = scmp.ne.s32.totalorder %s208, %s209
      %p220 = scmp.eq.s32.totalorder %s32, 0
      %p221 = por %p219, %p220
      %p222 = scmp.ne.s32.totalorder %s208, %s209
      %p223 = scmp.eq.s32.totalorder %s33, 3
      %p224 = por %p222, %p223
      %p226 = scmp.ne.s32.totalorder %s209, %s225
      %p227 = scmp.eq.s32.totalorder %s33, 0
      %p228 = por %p226, %p227
      %s229 = ssub.s32 %s35, %s42
      %p230 = scmp.eq.s32.totalorder %s229, 0
      %s232 = sadd.s32 %s231, 1
      %s233 = scalar_select %p230, %s231, %s232
      %p236 = pneg %p230
      %p237 = scmp.eq.s32.totalorder %s27, 3
      %p238 = por %p236, %p237
      %p239 = scmp.ne.s32.totalorder %s231, %s234
      %p240 = scmp.eq.s32.totalorder %s27, 0
      %p241 = por %p239, %p240
      %p242 = scmp.ne.s32.totalorder %s231, %s234
      %p243 = scmp.eq.s32.totalorder %s32, 3
      %p244 = por %p242, %p243
      %p245 = scmp.ne.s32.totalorder %s234, %s235
      %p246 = scmp.eq.s32.totalorder %s32, 0
      %p247 = por %p245, %p246
      %p248 = scmp.ne.s32.totalorder %s234, %s235
      %p249 = scmp.eq.s32.totalorder %s33, 3
      %p250 = por %p248, %p249
      %p252 = scmp.ne.s32.totalorder %s235, %s251
      %p253 = scmp.eq.s32.totalorder %s33, 0
      %p254 = por %p252, %p253
      %s255 = ssub.s32 %s35, %s42
      %p256 = scmp.eq.s32.totalorder %s255, 0
      %s258 = sadd.s32 %s257, 1
      %s259 = scalar_select %p256, %s257, %s258
      %p262 = pneg %p256
      %p263 = scmp.eq.s32.totalorder %s27, 3
      %p264 = por %p262, %p263
      %p265 = scmp.ne.s32.totalorder %s257, %s260
      %p266 = scmp.eq.s32.totalorder %s27, 0
      %p267 = por %p265, %p266
      %p268 = scmp.ne.s32.totalorder %s257, %s260
      %p269 = scmp.eq.s32.totalorder %s32, 3
      %p270 = por %p268, %p269
      %p271 = scmp.ne.s32.totalorder %s260, %s261
      %p272 = scmp.eq.s32.totalorder %s32, 0
      %p273 = por %p271, %p272
      %p274 = scmp.ne.s32.totalorder %s260, %s261
      %p275 = scmp.eq.s32.totalorder %s33, 3
      %p276 = por %p274, %p275
      %p278 = scmp.ne.s32.totalorder %s261, %s277
      %p279 = scmp.eq.s32.totalorder %s33, 0
      %p280 = por %p278, %p279
      %s281 = ssub.s32 %s34, %s46
      %p282 = scmp.eq.s32.totalorder %s281, 0
      %s284 = sadd.s32 %s283, 1
      %s285 = scalar_select %p282, %s283, %s284
      %p288 = pneg %p282
      %p289 = scmp.eq.s32.totalorder %s27, 3
      %p290 = por %p288, %p289
      %p291 = scmp.ne.s32.totalorder %s283, %s286
      %p292 = scmp.eq.s32.totalorder %s27, 0
      %p293 = por %p291, %p292
      %p294 = scmp.ne.s32.totalorder %s283, %s286
      %p295 = scmp.eq.s32.totalorder %s32, 3
      %p296 = por %p294, %p295
      %p297 = scmp.ne.s32.totalorder %s286, %s287
      %p298 = scmp.eq.s32.totalorder %s32, 0
      %p299 = por %p297, %p298
      %p300 = scmp.ne.s32.totalorder %s286, %s287
      %p301 = scmp.eq.s32.totalorder %s33, 3
      %p302 = por %p300, %p301
      %p304 = scmp.ne.s32.totalorder %s287, %s303
      %p305 = scmp.eq.s32.totalorder %s33, 0
      %p306 = por %p304, %p305
      %p307 = scmp.le.s32.totalorder 1, %s27
      %p308 = scmp.lt.s32.totalorder %s27, 5
      %p309 = pnand %p307, %p308
      %p310 = pneg %p309
      // Predicated region
      $region9: #{tpu_custom_call.1} parent=5 // pred_check
        _
      $region10: #{tpu_custom_call.1} parent=5 // pred_check_branch
        %312 = sbr.rel (%p309) target = $region12
      $region11: #{tpu_custom_call.1} parent=5 // pred_region
        %s313 = ssub.s32 %s27, 1
      $region12: #{tpu_custom_call.1} parent=5 // pred_fallthru
        _
      %p314 = scmp.lt.s32.totalorder %s27, 4
      // Predicated region
      $region13: #{tpu_custom_call.1} parent=5 // pred_check
        %p315 = pneg %p314
      $region14: #{tpu_custom_call.1} parent=5 // pred_check_branch
        %317 = sbr.rel (%p315) target = $region16
      $region15: #{tpu_custom_call.1} parent=5 // pred_region
        // Predicated region
        $region17: #{tpu_custom_call.1} parent=15 // pred_check
          %p318 = pneg %p59
        $region18: #{tpu_custom_call.1} parent=15 // pred_check_branch
          %320 = sbr.rel (%p318) target = $region20
        $region19: #{tpu_custom_call.1} parent=15 // pred_region
          %s321 = sand.u32 %s49, 1
          %s322 = scalar_lea.sflag [#allocation5], %s321
          %s323 = sand.u32 %s49, 1
          %s324 = smul.addr %s323, 16
          %s325 = scalar_lea.vmem [#allocation4], %s324
          %s327 = ssub.s32 256, 256
          %328 = vsyncadd %s322, %s327
          %s329 = smul.addr %s34, 2
          %s330 = smul.addr %s329, 128
          %s331 = scalar_lea.hbm %s0, %s330
          %s332 = sshll.u32 %s325, 4
          %s333 = int_to_ptr.vmem [resolvable:$true] %s332
          %338 = dma.hbm_to_vmem [thread:$0]  %s331, 256, %s333, %s322, 128, 128, 8
        $region20: #{tpu_custom_call.1} parent=15 // pred_fallthru
          _
        // Predicated region
        $region21: #{tpu_custom_call.1} parent=15 // pred_check
          %p339 = pneg %p85
        $region22: #{tpu_custom_call.1} parent=15 // pred_check_branch
          %341 = sbr.rel (%p339) target = $region24
        $region23: #{tpu_custom_call.1} parent=15 // pred_region
          %s342 = sand.u32 %s27, 1
          %s343 = scalar_lea.sflag [#allocation8], %s342
          %s344 = sand.u32 %s75, 1
          %s345 = smul.addr %s344, 16
          %s346 = scalar_lea.vmem [#allocation7], %s345
          %s348 = ssub.s32 256, 256
          %349 = vsyncadd %s343, %s348
          %s350 = smul.addr %s35, 2
          %s351 = smul.addr %s350, 128
          %s352 = scalar_lea.hbm %s1, %s351
          %s353 = sshll.u32 %s346, 4
          %s354 = int_to_ptr.vmem [resolvable:$true] %s353
          %359 = dma.hbm_to_vmem [thread:$0]  %s352, 256, %s354, %s343, 128, 128, 8
        $region24: #{tpu_custom_call.1} parent=15 // pred_fallthru
          _
        // Predicated region
        $region25: #{tpu_custom_call.1} parent=15 // pred_check
          %p360 = pneg %p111
        $region26: #{tpu_custom_call.1} parent=15 // pred_check_branch
          %362 = sbr.rel (%p360) target = $region28
        $region27: #{tpu_custom_call.1} parent=15 // pred_region
          %p363 = scmp.lt.s32.totalorder %s35, 1
          %s364 = scalar_select %p363, %s35, 1
          %s365 = scalar_lea.vmem %s2, %s364
        $region28: #{tpu_custom_call.1} parent=15 // pred_fallthru
          _
        // Predicated region
        $region29: #{tpu_custom_call.1} parent=15 // pred_check
          %p366 = pneg %p137
        $region30: #{tpu_custom_call.1} parent=15 // pred_check_branch
          %368 = sbr.rel (%p366) target = $region32
        $region31: #{tpu_custom_call.1} parent=15 // pred_region
          %s369 = sand.u32 %s27, 1
          %s370 = scalar_lea.sflag [#allocation8], %s369
          %s371 = sand.u32 %s127, 1
          %s372 = smul.addr %s371, 16
          %s373 = scalar_lea.vmem [#allocation9], %s372
          %s375 = ssub.s32 256, 256
          %376 = vsyncadd %s370, %s375
          %s377 = smul.addr %s35, 4
          %s378 = smul.addr %s377, 64
          %s379 = scalar_lea.hbm %s3, %s378
          %s380 = sshll.u32 %s373, 4
          %s381 = int_to_ptr.vmem [resolvable:$true] %s380
          %386 = dma.hbm_to_vmem [thread:$0]  %s379, 256, %s381, %s370, 64, 64, 4
        $region32: #{tpu_custom_call.1} parent=15 // pred_fallthru
          _
        // Predicated region
        $region33: #{tpu_custom_call.1} parent=15 // pred_check
          %p387 = pneg %p163
        $region34: #{tpu_custom_call.1} parent=15 // pred_check_branch
          %389 = sbr.rel (%p387) target = $region36
        $region35: #{tpu_custom_call.1} parent=15 // pred_region
          %s390 = sand.u32 %s153, 1
          %s391 = scalar_lea.sflag [#allocation11], %s390
          %s392 = sand.u32 %s153, 1
          %s393 = smul.addr %s392, 16
          %s394 = scalar_lea.vmem [#allocation10], %s393
          %s396 = ssub.s32 256, 256
          %397 = vsyncadd %s391, %s396
          %s398 = smul.addr %s35, 4
          %s399 = smul.addr %s398, 64
          %s400 = scalar_lea.hbm %s4, %s399
          %s401 = sshll.u32 %s394, 4
          %s402 = int_to_ptr.vmem [resolvable:$true] %s401
          %407 = dma.hbm_to_vmem [thread:$0]  %s400, 256, %s402, %s391, 64, 64, 4
        $region36: #{tpu_custom_call.1} parent=15 // pred_fallthru
          _
        // Predicated region
        $region37: #{tpu_custom_call.1} parent=15 // pred_check
          %p408 = pneg %p189
        $region38: #{tpu_custom_call.1} parent=15 // pred_check_branch
          %410 = sbr.rel (%p408) target = $region40
        $region39: #{tpu_custom_call.1} parent=15 // pred_region
          %p411 = scmp.lt.s32.totalorder %s35, 1
          %s412 = scalar_select %p411, %s35, 1
          %s413 = scalar_lea.vmem %s5, %s412
        $region40: #{tpu_custom_call.1} parent=15 // pred_fallthru
          _
        // Predicated region
        $region41: #{tpu_custom_call.1} parent=15 // pred_check
          %p414 = pneg %p215
        $region42: #{tpu_custom_call.1} parent=15 // pred_check_branch
          %416 = sbr.rel (%p414) target = $region44
        $region43: #{tpu_custom_call.1} parent=15 // pred_region
          %p417 = scmp.lt.s32.totalorder %s35, 1
          %s418 = scalar_select %p417, %s35, 1
          %s419 = scalar_lea.vmem %s6, %s418
        $region44: #{tpu_custom_call.1} parent=15 // pred_fallthru
          _
        // Predicated region
        $region45: #{tpu_custom_call.1} parent=15 // pred_check
          %p420 = pneg %p241
        $region46: #{tpu_custom_call.1} parent=15 // pred_check_branch
          %422 = sbr.rel (%p420) target = $region48
        $region47: #{tpu_custom_call.1} parent=15 // pred_region
          %p423 = scmp.lt.s32.totalorder %s35, 1
          %s424 = scalar_select %p423, %s35, 1
          %s425 = scalar_lea.vmem %s7, %s424
        $region48: #{tpu_custom_call.1} parent=15 // pred_fallthru
          _
        // Predicated region
        $region49: #{tpu_custom_call.1} parent=15 // pred_check
          %p426 = pneg %p267
        $region50: #{tpu_custom_call.1} parent=15 // pred_check_branch
          %428 = sbr.rel (%p426) target = $region52
        $region51: #{tpu_custom_call.1} parent=15 // pred_region
          %p429 = scmp.lt.s32.totalorder %s35, 1
          %s430 = scalar_select %p429, %s35, 1
          %s431 = scalar_lea.vmem %s8, %s430
        $region52: #{tpu_custom_call.1} parent=15 // pred_fallthru
          _
      $region16: #{tpu_custom_call.1} parent=5 // pred_fallthru
        _
      %p432 = scmp.le.s32.totalorder 1, %s27
      %p433 = scmp.lt.s32.totalorder %s27, 5
      %p434 = pnand %p432, %p433
      %p435 = pneg %p434
      // Predicated region
      $region53: #{tpu_custom_call.1} parent=5 // pred_check
        _
      $region54: #{tpu_custom_call.1} parent=5 // pred_check_branch
        %437 = sbr.rel (%p434) target = $region56
      $region55: #{tpu_custom_call.1} parent=5 // pred_region
        %s438 = ssub.s32 %s27, 1
        %s439 = sand.u32 %s52, 1
        %s440 = scalar_lea.sflag [#allocation5], %s439
        %s441 = sand.u32 %s52, 1
        %s442 = smul.addr %s441, 16
        %s443 = scalar_lea.vmem [#allocation4], %s442
        // Predicated region
        $region57: #{tpu_custom_call.1} parent=55 // pred_check
          %p444 = pneg %p65
        $region58: #{tpu_custom_call.1} parent=55 // pred_check_branch
          %446 = sbr.rel (%p444) target = $region60
        $region59: #{tpu_custom_call.1} parent=55 // pred_region
          %447 = dma.done %s440, 256
        $region60: #{tpu_custom_call.1} parent=55 // pred_fallthru
          _
        %s448 = sand.u32 %s32, 1
        %s449 = scalar_lea.sflag [#allocation8], %s448
        %s450 = sand.u32 %s78, 1
        %s451 = smul.addr %s450, 16
        %s452 = scalar_lea.vmem [#allocation7], %s451
        // Predicated region
        $region61: #{tpu_custom_call.1} parent=55 // pred_check
          %p453 = pneg %p91
        $region62: #{tpu_custom_call.1} parent=55 // pred_check_branch
          %455 = sbr.rel (%p453) target = $region64
        $region63: #{tpu_custom_call.1} parent=55 // pred_region
          %456 = dma.done %s449, 256
        $region64: #{tpu_custom_call.1} parent=55 // pred_fallthru
          _
        %s457 = sand.u32 %s32, 1
        %s458 = scalar_lea.sflag [#allocation8], %s457
        %s459 = sand.u32 %s130, 1
        %s460 = smul.addr %s459, 16
        %s461 = scalar_lea.vmem [#allocation9], %s460
        // Predicated region
        $region65: #{tpu_custom_call.1} parent=55 // pred_check
          %p462 = pneg %p143
        $region66: #{tpu_custom_call.1} parent=55 // pred_check_branch
          %464 = sbr.rel (%p462) target = $region68
        $region67: #{tpu_custom_call.1} parent=55 // pred_region
          %465 = dma.done %s458, 256
        $region68: #{tpu_custom_call.1} parent=55 // pred_fallthru
          _
        %s466 = sand.u32 %s156, 1
        %s467 = scalar_lea.sflag [#allocation11], %s466
        %s468 = sand.u32 %s156, 1
        %s469 = smul.addr %s468, 16
        %s470 = scalar_lea.vmem [#allocation10], %s469
        // Predicated region
        $region69: #{tpu_custom_call.1} parent=55 // pred_check
          %p471 = pneg %p169
        $region70: #{tpu_custom_call.1} parent=55 // pred_check_branch
          %473 = sbr.rel (%p471) target = $region72
        $region71: #{tpu_custom_call.1} parent=55 // pred_region
          %474 = dma.done %s467, 256
        $region72: #{tpu_custom_call.1} parent=55 // pred_fallthru
          _
        %s475 = sand.u32 %s52, 1
        %s476 = scalar_lea.sflag [#allocation5], %s475
        %s477 = sand.u32 %s52, 1
        %s478 = smul.addr %s477, 16
        %s479 = scalar_lea.vmem [#allocation4], %s478
        %p480 = pneg %p65
        %p481 = pneg %p62
        %s482 = sand.u32 %s32, 1
        %s483 = scalar_lea.sflag [#allocation8], %s482
        %s484 = sand.u32 %s78, 1
        %s485 = smul.addr %s484, 16
        %s486 = scalar_lea.vmem [#allocation7], %s485
        %p487 = pneg %p91
        %p488 = pneg %p88
        %p489 = scmp.lt.s32.totalorder %s37, 1
        %s490 = scalar_select %p489, %s37, 1
        %s491 = scalar_lea.vmem %s2, %s490
        %p492 = pneg %p117
        %p493 = pneg %p114
        %s494 = sand.u32 %s32, 1
        %s495 = scalar_lea.sflag [#allocation8], %s494
        %s496 = sand.u32 %s130, 1
        %s497 = smul.addr %s496, 16
        %s498 = scalar_lea.vmem [#allocation9], %s497
        %p499 = pneg %p143
        %p500 = pneg %p140
        %s501 = sand.u32 %s156, 1
        %s502 = scalar_lea.sflag [#allocation11], %s501
        %s503 = sand.u32 %s156, 1
        %s504 = smul.addr %s503, 16
        %s505 = scalar_lea.vmem [#allocation10], %s504
        %p506 = pneg %p169
        %p507 = pneg %p166
        %p508 = scmp.lt.s32.totalorder %s37, 1
        %s509 = scalar_select %p508, %s37, 1
        %s510 = scalar_lea.vmem %s5, %s509
        %p511 = pneg %p195
        %p512 = pneg %p192
        %p513 = scmp.lt.s32.totalorder %s37, 1
        %s514 = scalar_select %p513, %s37, 1
        %s515 = scalar_lea.vmem %s6, %s514
        %p516 = pneg %p221
        %p517 = pneg %p218
        %p518 = scmp.lt.s32.totalorder %s37, 1
        %s519 = scalar_select %p518, %s37, 1
        %s520 = scalar_lea.vmem %s7, %s519
        %p521 = pneg %p247
        %p522 = pneg %p244
        %p523 = scmp.lt.s32.totalorder %s37, 1
        %s524 = scalar_select %p523, %s37, 1
        %s525 = scalar_lea.vmem %s8, %s524
        %p526 = pneg %p273
        %p527 = pneg %p270
        %p528 = pneg %p299
        %p529 = pneg %p296
        %s530 = sand.u32 %s286, 1
        %s531 = scalar_lea.sflag [#allocation6], %s530
        %s532 = sand.u32 %s286, 1
        %s533 = smul.addr %s532, 16
        %s534 = scalar_lea.vmem [#allocation12], %s533
        %p535 = scmp.lt.s32.totalorder %s37, 1
        %s536 = scalar_select %p535, %s37, 1
        %s537 = scalar_lea.vmem %s2, %s536
        %p538 = scmp.lt.s32.totalorder %s37, 1
        %s539 = scalar_select %p538, %s37, 1
        %s540 = scalar_lea.vmem %s5, %s539
        %p541 = scmp.lt.s32.totalorder %s37, 1
        %s542 = scalar_select %p541, %s37, 1
        %s543 = scalar_lea.vmem %s6, %s542
        %p544 = scmp.lt.s32.totalorder %s37, 1
        %s545 = scalar_select %p544, %s37, 1
        %s546 = scalar_lea.vmem %s7, %s545
        %p547 = scmp.lt.s32.totalorder %s37, 1
        %s548 = scalar_select %p547, %s37, 1
        %s549 = scalar_lea.vmem %s8, %s548
        %p551 = scmp.eq.s32.totalorder %s37, 0
        // Predicated region
        $region73: #{tpu_custom_call.1} parent=55 // pred_check
          %p552 = pneg %p551
        $region74: #{tpu_custom_call.1} parent=55 // pred_check_branch
          %554 = sbr.rel (%p552) target = $region76
        $region75: #{tpu_custom_call.1} parent=55 // pred_region
          %v555 = vld [vmem:[%s443] sm:$0xff]
          %v556 = vld [vmem:[%s443 + $0x8] sm:$0xff]
          %vm557 = vcmask 261120
          %558 = vst.msk [vmem:[#allocation3] sm:$0xff] %vm557, %v555
          %559 = vst.msk [vmem:[#allocation3 + $0x8] sm:$0xff] %vm557, %v556
          %560 = vst.msk [vmem:[#allocation2] sm:$0xff] %vm557, 0.0
          %561 = vst.msk [vmem:[#allocation2 + $0x8] sm:$0xff] %vm557, 0.0
        $region76: #{tpu_custom_call.1} parent=55 // pred_fallthru
          _
        %v562 = vld [vmem:[#allocation3] sm:$0xff]
        %v563 = vld [vmem:[#allocation3 + $0x8] sm:$0xff]
        %v564 = vld [vmem:[%s546] sm:$0x1]
        %v565 = vld [vmem:[%s549] sm:$0x1]
        %vm566 = vcmask 261120
        %v567 = vsel %vm566, %v562, 0.0
        %568 = vadd.xlane.f32.xlu0 %v567
        %v569 = vpop.xlane.xlu0 %568
        %v570 = vsel %vm566, %v563, 0.0
        %571 = vadd.xlane.f32.xlu0 %v570
        %v572 = vpop.xlane.xlu0 %571
        %v573 = vrcp.pop 32.0
        %v574 = vmul.f32 %v569, %v573
        %v575 = vmul.f32 %v572, %v573
        %v576 = vsub.f32 %v562, %v574
        %v577 = vsub.f32 %v563, %v575
        %v578 = vmul.f32 %v576, %v576
        %v579 = vmul.f32 %v577, %v577
        %v580 = vsel %vm566, %v578, 0.0
        %581 = vadd.xlane.f32.xlu0 %v580
        %v582 = vpop.xlane.xlu0 %581
        %v583 = vsel %vm566, %v579, 0.0
        %584 = vadd.xlane.f32.xlu0 %v583
        %v585 = vpop.xlane.xlu0 %584
        %v586 = vmul.f32 %v582, %v573
        %v587 = vmul.f32 %v585, %v573
        %v588 = vadd.f32 %v586, 1e-05
        %v589 = vadd.f32 %v587, 1e-05
        %v590 = vrsqrt.pop %v588
        %v591 = vrsqrt.pop %v589
        %v592 = vmul.f32 %v576, %v590
        %v593 = vmul.f32 %v577, %v591
        %v595 = vlaneseq
        %v596 = vshrl.u32 %v595, 7
        %v597 = vsub.s32 0, %v596
        %v598 = vrot.slane %v564, %v597
        %v600 = vmul.f32 %v592, %v598
        %v601 = vmul.f32 %v593, %v598
        %v603 = vlaneseq
        %v604 = vshrl.u32 %v603, 7
        %v605 = vsub.s32 0, %v604
        %v606 = vrot.slane %v565, %v605
        %v608 = vadd.f32 %v600, %v606
        %v609 = vadd.f32 %v601, %v606
        %610 = vst.msk [vmem:[#allocation2 + $0x10] sm:$0xff] %vm566, %v608
        %611 = vst.msk [vmem:[#allocation2 + $0x18] sm:$0xff] %vm566, %v609
        %v612 = vld [vmem:[%s452] sm:$0xff]
        %v613 = vld [vmem:[%s452 + $0x8] sm:$0xff]
        %v614 = vlaneseq
        %v615 = vshrl.u32 %v614, 7
        %v616 = vsub.s32 0, %v615
        %v617 = vrot.slane %v612, %v616
        %v618 = vmul.f32 %v608, %v617
        %v619 = vmul.f32 %v609, %v617
        %v620 = vld [vmem:[#allocation2 + $0xf] sm:$0xff]
        %v621 = vld [vmem:[#allocation2 + $0x17] sm:$0xff]
        %v622 = vlaneseq
        %v623 = vshrl.u32 %v622, 7
        %v624 = vsub.s32 1, %v623
        %v625 = vrot.slane %v612, %v624
        %v626 = vmul.f32 %v620, %v625
        %v627 = vmul.f32 %v621, %v625
        %v628 = vadd.f32 %v618, %v626
        %v629 = vadd.f32 %v619, %v627
        %v630 = vld [vmem:[#allocation2 + $0xe] sm:$0xff]
        %v631 = vld [vmem:[#allocation2 + $0x16] sm:$0xff]
        %v632 = vlaneseq
        %v633 = vshrl.u32 %v632, 7
        %v634 = vsub.s32 2, %v633
        %v635 = vrot.slane %v612, %v634
        %v636 = vmul.f32 %v630, %v635
        %v637 = vmul.f32 %v631, %v635
        %v638 = vadd.f32 %v628, %v636
        %v639 = vadd.f32 %v629, %v637
        %v640 = vld [vmem:[#allocation2 + $0xd] sm:$0xff]
        %v641 = vld [vmem:[#allocation2 + $0x15] sm:$0xff]
        %v642 = vlaneseq
        %v643 = vshrl.u32 %v642, 7
        %v644 = vsub.s32 3, %v643
        %v645 = vrot.slane %v612, %v644
        %v646 = vmul.f32 %v640, %v645
        %v647 = vmul.f32 %v641, %v645
        %v648 = vadd.f32 %v638, %v646
        %v649 = vadd.f32 %v639, %v647
        %v650 = vld [vmem:[#allocation2 + $0xc] sm:$0xff]
        %v651 = vld [vmem:[#allocation2 + $0x14] sm:$0xff]
        %v652 = vlaneseq
        %v653 = vshrl.u32 %v652, 7
        %v654 = vsub.s32 4, %v653
        %v655 = vrot.slane %v612, %v654
        %v656 = vmul.f32 %v650, %v655
        %v657 = vmul.f32 %v651, %v655
        %v658 = vadd.f32 %v648, %v656
        %v659 = vadd.f32 %v649, %v657
        %v660 = vld [vmem:[#allocation2 + $0xb] sm:$0xff]
        %v661 = vld [vmem:[#allocation2 + $0x13] sm:$0xff]
        %v662 = vlaneseq
        %v663 = vshrl.u32 %v662, 7
        %v664 = vsub.s32 5, %v663
        %v665 = vrot.slane %v612, %v664
        %v666 = vmul.f32 %v660, %v665
        %v667 = vmul.f32 %v661, %v665
        %v668 = vadd.f32 %v658, %v666
        %v669 = vadd.f32 %v659, %v667
        %v670 = vld [vmem:[#allocation2 + $0xa] sm:$0xff]
        %v671 = vld [vmem:[#allocation2 + $0x12] sm:$0xff]
        %v672 = vlaneseq
        %v673 = vshrl.u32 %v672, 7
        %v674 = vsub.s32 6, %v673
        %v675 = vrot.slane %v612, %v674
        %v676 = vmul.f32 %v670, %v675
        %v677 = vmul.f32 %v671, %v675
        %v678 = vadd.f32 %v668, %v676
        %v679 = vadd.f32 %v669, %v677
        %v680 = vld [vmem:[#allocation2 + $0x9] sm:$0xff]
        %v681 = vld [vmem:[#allocation2 + $0x11] sm:$0xff]
        %v682 = vlaneseq
        %v683 = vshrl.u32 %v682, 7
        %v684 = vsub.s32 7, %v683
        %v685 = vrot.slane %v612, %v684
        %v686 = vmul.f32 %v680, %v685
        %v687 = vmul.f32 %v681, %v685
        %v688 = vadd.f32 %v678, %v686
        %v689 = vadd.f32 %v679, %v687
        %v690 = vld [vmem:[#allocation2 + $0x8] sm:$0xff]
        %v691 = vld [vmem:[#allocation2 + $0x10] sm:$0xff]
        %v692 = vlaneseq
        %v693 = vshrl.u32 %v692, 7
        %v694 = vsub.s32 0, %v693
        %v695 = vrot.slane %v613, %v694
        %v696 = vmul.f32 %v690, %v695
        %v697 = vmul.f32 %v691, %v695
        %v698 = vadd.f32 %v688, %v696
        %v699 = vadd.f32 %v689, %v697
        %v700 = vld [vmem:[#allocation2 + $0x7] sm:$0xff]
        %v701 = vlaneseq
        %v702 = vshrl.u32 %v701, 7
        %v703 = vsub.s32 1, %v702
        %v704 = vrot.slane %v613, %v703
        %v705 = vmul.f32 %v700, %v704
        %v706 = vmul.f32 %v620, %v704
        %v707 = vadd.f32 %v698, %v705
        %v708 = vadd.f32 %v699, %v706
        %v709 = vld [vmem:[#allocation2 + $0x6] sm:$0xff]
        %v710 = vlaneseq
        %v711 = vshrl.u32 %v710, 7
        %v712 = vsub.s32 2, %v711
        %v713 = vrot.slane %v613, %v712
        %v714 = vmul.f32 %v709, %v713
        %v715 = vmul.f32 %v630, %v713
        %v716 = vadd.f32 %v707, %v714
        %v717 = vadd.f32 %v708, %v715
        %v718 = vld [vmem:[#allocation2 + $0x5] sm:$0xff]
        %v719 = vlaneseq
        %v720 = vshrl.u32 %v719, 7
        %v721 = vsub.s32 3, %v720
        %v722 = vrot.slane %v613, %v721
        %v723 = vmul.f32 %v718, %v722
        %v724 = vmul.f32 %v640, %v722
        %v725 = vadd.f32 %v716, %v723
        %v726 = vadd.f32 %v717, %v724
        %v727 = vld [vmem:[#allocation2 + $0x4] sm:$0xff]
        %v728 = vlaneseq
        %v729 = vshrl.u32 %v728, 7
        %v730 = vsub.s32 4, %v729
        %v731 = vrot.slane %v613, %v730
        %v732 = vmul.f32 %v727, %v731
        %v733 = vmul.f32 %v650, %v731
        %v734 = vadd.f32 %v725, %v732
        %v735 = vadd.f32 %v726, %v733
        %v736 = vld [vmem:[#allocation2 + $0x3] sm:$0xff]
        %v737 = vlaneseq
        %v738 = vshrl.u32 %v737, 7
        %v739 = vsub.s32 5, %v738
        %v740 = vrot.slane %v613, %v739
        %v741 = vmul.f32 %v736, %v740
        %v742 = vmul.f32 %v660, %v740
        %v743 = vadd.f32 %v734, %v741
        %v744 = vadd.f32 %v735, %v742
        %v745 = vld [vmem:[#allocation2 + $0x2] sm:$0xff]
        %v746 = vlaneseq
        %v747 = vshrl.u32 %v746, 7
        %v748 = vsub.s32 6, %v747
        %v749 = vrot.slane %v613, %v748
        %v750 = vmul.f32 %v745, %v749
        %v751 = vmul.f32 %v670, %v749
        %v752 = vadd.f32 %v743, %v750
        %v753 = vadd.f32 %v744, %v751
        %v754 = vld [vmem:[#allocation2 + $0x1] sm:$0xff]
        %v755 = vlaneseq
        %v756 = vshrl.u32 %v755, 7
        %v757 = vsub.s32 7, %v756
        %v758 = vrot.slane %v613, %v757
        %v759 = vmul.f32 %v754, %v758
        %v760 = vmul.f32 %v680, %v758
        %v761 = vadd.f32 %v752, %v759
        %v762 = vadd.f32 %v753, %v760
        %v763 = vld [vmem:[%s537] sm:$0x1]
        %v765 = vlaneseq
        %v766 = vshrl.u32 %v765, 7
        %v767 = vsub.s32 0, %v766
        %v768 = vrot.slane %v763, %v767
        %v770 = vmul.f32 %v608, %v768
        %v771 = vmul.f32 %v609, %v768
        %v772 = vadd.f32 %v761, %v770
        %v773 = vadd.f32 %v762, %v771
        %v774 = vmul.f32 %v772, %v772
        %v775 = vmul.f32 %v773, %v773
        %v776 = vmul.f32 %v772, %v774
        %v777 = vmul.f32 %v773, %v775
        %v778 = vmul.f32 %v776, 0.044715
        %v779 = vmul.f32 %v777, 0.044715
        %v780 = vadd.f32 %v772, %v778
        %v781 = vadd.f32 %v773, %v779
        %v782 = vmul.f32 %v780, 0.7978846
        %v783 = vmul.f32 %v781, 0.7978846
        %v784 = vtanh.pop %v782
        %v785 = vtanh.pop %v783
        %v786 = vadd.f32 %v784, 1.0
        %v787 = vadd.f32 %v785, 1.0
        %v788 = vmul.f32 %v786, 0.5
        %v789 = vmul.f32 %v787, 0.5
        %v790 = vmul.f32 %v772, %v788
        %v791 = vmul.f32 %v773, %v789
        %v792 = vpack.c.bf16 %v791, %v790
        %v793 = vld [vmem:[%s461] sm:$0xf]
        %v794 = vld [vmem:[%s461 + $0x4] sm:$0xf]
        %v795 = vld [vmem:[%s461 + $0x8] sm:$0xf]
        %v796 = vld [vmem:[%s461 + $0xc] sm:$0xf]
        %v797 = vld [vmem:[%s540] sm:$0x1]
        %v799 = vlaneseq
        %v800 = vshrl.u32 %v799, 7
        %v801 = vsub.s32 0, %v800
        %v802 = vrot.slane %v797, %v801
        %v808 = vunpack.c.l.b16 %v793
        %v809 = vunpack.c.l.b16 %v794
        %v810 = vunpack.c.l.b16 %v795
        %v811 = vunpack.c.l.b16 %v796
        %v812 = vpack.c.b16 %v809, %v808
        %v813 = vpack.c.b16 %v811, %v810
        %v817 = vsel %vm566, %v792, 0
        %819 = vmatprep.subr.bf16.mxu0 0
        %820 = vmatpush1.bf16.msra.mxu0 %v812
        %821 = vmatprep.subr.bf16.mxu0 0
        %822 = vmatpush1.bf16.msra.mxu0 %v813
        %823 = vmatprep.subr.bf16.mxu0 0
        %824 = vmatpush1.bf16.msra.mxu0 0
        %825 = vmatprep.subr.bf16.mxu0 0
        %826 = vmatpush1.bf16.msra.mxu0 0
        %827 = vmatprep.subr.bf16.mxu0 0
        %828 = vmatpush1.bf16.msra.mxu0 0
        %829 = vmatprep.subr.bf16.mxu0 0
        %830 = vmatpush1.bf16.msra.mxu0 0
        %831 = vmatprep.subr.bf16.mxu0 0
        %832 = vmatpush1.bf16.msra.mxu0 0
        %833 = vmatprep.subr.bf16.mxu0 0
        %834 = vmatpush1.bf16.msra.mxu0 0
        %835 = vmatprep.subr.bf16.mxu0 0
        %836 = vmatpush1.bf16.msra.mxu0 0
        %837 = vmatprep.subr.bf16.mxu0 0
        %838 = vmatpush1.bf16.msra.mxu0 0
        %839 = vmatprep.subr.bf16.mxu0 0
        %840 = vmatpush1.bf16.msra.mxu0 0
        %841 = vmatprep.subr.bf16.mxu0 0
        %842 = vmatpush1.bf16.msra.mxu0 0
        %843 = vmatprep.subr.bf16.mxu0 0
        %844 = vmatpush1.bf16.msra.mxu0 0
        %845 = vmatprep.subr.bf16.mxu0 0
        %846 = vmatpush1.bf16.msra.mxu0 0
        %847 = vmatprep.subr.bf16.mxu0 0
        %848 = vmatpush1.bf16.msra.mxu0 0
        %849 = vmatprep.subr.bf16.mxu0 0
        %850 = vmatpush1.bf16.msra.mxu0 0
        %851 = vmatprep.mubr.bf16.mxu0 0
        %852 = vmatmul.mubr.bf16.gmra.mrb[0].mxu0 %v817
        %v853 = vpop.f32.mrb[0].mxu0
        %v854 = vadd.f32 %v802, %v853
        %v855 = vpop.f32.mrb[0].mxu0
        %v856 = vpop.f32.mrb[0].mxu0
        %v857 = vadd.f32 %v802, %v856
        %v858 = vpop.f32.mrb[0].mxu0
        %859 = vdwg.mxu0
        %v860 = vld [vmem:[%s470] sm:$0xf]
        %v861 = vld [vmem:[%s470 + $0x4] sm:$0xf]
        %v862 = vld [vmem:[%s470 + $0x8] sm:$0xf]
        %v863 = vld [vmem:[%s470 + $0xc] sm:$0xf]
        %v864 = vld [vmem:[%s543] sm:$0x1]
        %v866 = vlaneseq
        %v867 = vshrl.u32 %v866, 7
        %v868 = vsub.s32 0, %v867
        %v869 = vrot.slane %v864, %v868
        %v875 = vunpack.c.l.b16 %v860
        %v876 = vunpack.c.l.b16 %v861
        %v877 = vunpack.c.l.b16 %v862
        %v878 = vunpack.c.l.b16 %v863
        %v879 = vpack.c.b16 %v876, %v875
        %v880 = vpack.c.b16 %v878, %v877
        %883 = vmatprep.subr.bf16.mxu0 0
        %884 = vmatpush1.bf16.msra.mxu0 %v879
        %885 = vmatprep.subr.bf16.mxu0 0
        %886 = vmatpush1.bf16.msra.mxu0 %v880
        %887 = vmatprep.subr.bf16.mxu0 0
        %888 = vmatpush1.bf16.msra.mxu0 0
        %889 = vmatprep.subr.bf16.mxu0 0
        %890 = vmatpush1.bf16.msra.mxu0 0
        %891 = vmatprep.subr.bf16.mxu0 0
        %892 = vmatpush1.bf16.msra.mxu0 0
        %893 = vmatprep.subr.bf16.mxu0 0
        %894 = vmatpush1.bf16.msra.mxu0 0
        %895 = vmatprep.subr.bf16.mxu0 0
        %896 = vmatpush1.bf16.msra.mxu0 0
        %897 = vmatprep.subr.bf16.mxu0 0
        %898 = vmatpush1.bf16.msra.mxu0 0
        %899 = vmatprep.subr.bf16.mxu0 0
        %900 = vmatpush1.bf16.msra.mxu0 0
        %901 = vmatprep.subr.bf16.mxu0 0
        %902 = vmatpush1.bf16.msra.mxu0 0
        %903 = vmatprep.subr.bf16.mxu0 0
        %904 = vmatpush1.bf16.msra.mxu0 0
        %905 = vmatprep.subr.bf16.mxu0 0
        %906 = vmatpush1.bf16.msra.mxu0 0
        %907 = vmatprep.subr.bf16.mxu0 0
        %908 = vmatpush1.bf16.msra.mxu0 0
        %909 = vmatprep.subr.bf16.mxu0 0
        %910 = vmatpush1.bf16.msra.mxu0 0
        %911 = vmatprep.subr.bf16.mxu0 0
        %912 = vmatpush1.bf16.msra.mxu0 0
        %913 = vmatprep.subr.bf16.mxu0 0
        %914 = vmatpush1.bf16.msra.mxu0 0
        %915 = vmatprep.mubr.bf16.mxu0 0
        %916 = vmatmul.mubr.bf16.gmra.mrb[0].mxu0 %v817
        %v917 = vpop.f32.mrb[0].mxu0
        %v918 = vadd.f32 %v869, %v917
        %v919 = vpop.f32.mrb[0].mxu0
        %v920 = vpop.f32.mrb[0].mxu0
        %v921 = vadd.f32 %v869, %v920
        %v922 = vpop.f32.mrb[0].mxu0
        %923 = vdwg.mxu0
        %v924 = vxor.u32 %v918, 2147483648
        %v925 = vxor.u32 %v921, 2147483648
        %v926 = vmul.f32 %v924, 1.442695
        %v927 = vpow.pop %v926
        %v928 = vmul.f32 %v925, 1.442695
        %v929 = vpow.pop %v928
        %v930 = vadd.f32 %v927, 1.0
        %v931 = vadd.f32 %v929, 1.0
        %v932 = vrcp.pop %v930
        %v933 = vmul.f32 1.0, %v932
        %v934 = vrcp.pop %v931
        %v935 = vmul.f32 1.0, %v934
        %v936 = vmul.f32 %v854, %v933
        %v937 = vmul.f32 %v857, %v935
        %v938 = vadd.f32 %v936, %v562
        %v939 = vadd.f32 %v937, %v563
        %940 = vst.msk [vmem:[#allocation3] sm:$0xff] %vm566, %v938
        %941 = vst.msk [vmem:[#allocation3 + $0x8] sm:$0xff] %vm566, %v939
        %p942 = scmp.eq.s32.totalorder %s37, 1
        // Predicated region
        $region77: #{tpu_custom_call.1} parent=55 // pred_check
          %p943 = pneg %p942
        $region78: #{tpu_custom_call.1} parent=55 // pred_check_branch
          %945 = sbr.rel (%p943) target = $region80
        $region79: #{tpu_custom_call.1} parent=55 // pred_region
          %v946 = vld [vmem:[#allocation3] sm:$0xff]
          %v947 = vld [vmem:[#allocation3 + $0x8] sm:$0xff]
          %948 = vst.msk [vmem:[%s534] sm:$0xff] %vm566, %v946
          %949 = vst.msk [vmem:[%s534 + $0x8] sm:$0xff] %vm566, %v947
        $region80: #{tpu_custom_call.1} parent=55 // pred_fallthru
          _
        %s950 = sand.u32 %s286, 1
        %s951 = scalar_lea.sflag [#allocation6], %s950
        %s952 = sand.u32 %s286, 1
        %s953 = smul.addr %s952, 16
        %s954 = scalar_lea.vmem [#allocation12], %s953
        // Predicated region
        $region81: #{tpu_custom_call.1} parent=55 // pred_check
          %p955 = pneg %p296
        $region82: #{tpu_custom_call.1} parent=55 // pred_check_branch
          %957 = sbr.rel (%p955) target = $region84
        $region83: #{tpu_custom_call.1} parent=55 // pred_region
          %s959 = ssub.s32 256, 256
          %960 = vsyncadd %s951, %s959
          %s961 = smul.addr %s36, 2
          %s962 = smul.addr %s961, 128
          %s963 = scalar_lea.hbm %s9, %s962
          %s964 = sshll.u32 %s954, 4
          %s965 = int_to_ptr.vmem [resolvable:$true] %s964
          %970 = dma.vmem_to_hbm [thread:$0]  %s965, 256, %s963, %s951, 128, 128, 8
        $region84: #{tpu_custom_call.1} parent=55 // pred_fallthru
          _
      $region56: #{tpu_custom_call.1} parent=5 // pred_fallthru
        _
      %p971 = scmp.le.s32.totalorder 2, %s27
      // Predicated region
      $region85: #{tpu_custom_call.1} parent=5 // pred_check
        %p972 = pneg %p971
      $region86: #{tpu_custom_call.1} parent=5 // pred_check_branch
        %974 = sbr.rel (%p972) target = $region88
      $region87: #{tpu_custom_call.1} parent=5 // pred_region
        %s975 = ssub.s32 %s27, 2
        // Predicated region
        $region89: #{tpu_custom_call.1} parent=87 // pred_check
          %p976 = pneg %p302
        $region90: #{tpu_custom_call.1} parent=87 // pred_check_branch
          %978 = sbr.rel (%p976) target = $region92
        $region91: #{tpu_custom_call.1} parent=87 // pred_region
          %s979 = sand.u32 %s287, 1
          %s980 = scalar_lea.sflag [#allocation6], %s979
          %s981 = sand.u32 %s287, 1
          %s982 = smul.addr %s981, 16
          %s983 = scalar_lea.vmem [#allocation12], %s982
          %984 = dma.done %s980, 256
        $region92: #{tpu_custom_call.1} parent=87 // pred_fallthru
          _
      $region88: #{tpu_custom_call.1} parent=5 // pred_fallthru
        _
    $region6: #{tpu_custom_call.1} parent=1 // loop_footer
      %s31 = sadd.s32 1, %s27
    $region7: #{tpu_custom_call.1} parent=1 // loop_footer_branch
      %26 = sbr.rel target = $region3
    $region8: #{tpu_custom_call.1} parent=1 // loop_exit
      _
    %985 = vsyncpa [#allocation5], 1
    %s986 = scalar_lea.sflag [#allocation5], 1
    %987 = vsyncpa %s986, 1
    %988 = vsyncpa [#allocation8], 1
    %s989 = scalar_lea.sflag [#allocation8], 1
    %990 = vsyncpa %s989, 1
    %991 = vsyncpa [#allocation11], 1
    %s992 = scalar_lea.sflag [#allocation11], 1
    %993 = vsyncpa %s992, 1
    %994 = vsyncpa [#allocation6], 1
    %s995 = scalar_lea.sflag [#allocation6], 1
    %996 = vsyncpa %s995, 1

</llo_original>
